<compile_context>
chip_gen: v6e
topology: v6e:2x2x1
jax: 0.10.0
libtpu: 0.0.40
codegen_flags: <defaults>
</compile_context>

<pallas_src>
import math

import jax
import jax.numpy as jnp
from jax.experimental import pallas as pl
from jax.experimental.pallas import tpu as pltpu

EPS = 1e-5


def _decoder_kernel(x_ref, w_ref, b_ref, g_ref, be_ref, o_ref):
    # x: [B, T] f32, w: [T, V] f32 (K-major), b/g/be: [1, V] f32, o: [B, V] f32
    x = x_ref[...]
    w = w_ref[...]

    # Linear (MXU): y = x @ w  ([M,K] x [K,N], lane-dense N), f32 accumulate.
    y = jax.lax.dot_general(
        x, w,
        dimension_numbers=(((1,), (0,)), ((), ())),
        preferred_element_type=jnp.float32,
    ) + b_ref[...]                                  # [B, V] f32

    # BatchNorm1d in training mode: batch statistics over axis 0, biased var.
    mean = jnp.mean(y, axis=0, keepdims=True)
    yc = y - mean
    var = jnp.mean(yc * yc, axis=0, keepdims=True)
    y_n = yc * jax.lax.rsqrt(var + EPS) * g_ref[...] + be_ref[...]

    # Softmax over dim=1 (vocab axis), numerically stable, exact division so
    # rows sum to 1 at f32 precision.
    m = jnp.max(y_n, axis=1, keepdims=True)
    e = jnp.exp(y_n - m)
    denom = jnp.sum(e, axis=1, keepdims=True)
    o_ref[...] = e / denom


def prepare_params(weight, bias, gamma, beta):
    """One-time parameter prep (NOT on the per-call path).

    weight: [V, T] PyTorch layout -> stored [T, V] (K-major, lane-dense).
    bias/gamma/beta: [V] -> stored [1, V].
    """
    V = weight.shape[0]
    return (
        jnp.asarray(weight, jnp.float32).T,           # [T, V]
        jnp.asarray(bias, jnp.float32).reshape(1, V),
        jnp.asarray(gamma, jnp.float32).reshape(1, V),
        jnp.asarray(beta, jnp.float32).reshape(1, V),
    )


def ne_topic_decoder(proportions, w_t, bias_row, gamma_row, beta_row):
    """proportions: [B, T] f32. w_t: [T, V]. bias/gamma/beta: [1, V]. Returns [B, V]."""
    B, T = proportions.shape
    V = w_t.shape[1]

    full = lambda shape: pl.BlockSpec(shape, lambda: (0,) * len(shape))

    return pl.pallas_call(
        _decoder_kernel,
        out_shape=jax.ShapeDtypeStruct((B, V), jnp.float32),
        grid_spec=pltpu.PrefetchScalarGridSpec(
            num_scalar_prefetch=0,
            grid=(),
            in_specs=[
                full((B, T)),   # proportions
                full((T, V)),   # weight, K-major / lane-dense
                full((1, V)),   # linear bias
                full((1, V)),   # bn gamma
                full((1, V)),   # bn beta
            ],
            out_specs=full((B, V)),
        ),
    )(proportions, w_t, bias_row, gamma_row, beta_row)


def _reference(proportions, weight, bias, gamma, beta):
    """Pure-JAX reference mirroring the PyTorch forward (training-mode BN)."""
    y = proportions @ weight.T + bias
    mean = jnp.mean(y, axis=0, keepdims=True)
    yc = y - mean
    var = jnp.mean(yc * yc, axis=0, keepdims=True)
    y_n = yc * jax.lax.rsqrt(var + EPS) * gamma + beta
    return jax.nn.softmax(y_n, axis=1)


if __name__ == "__main__":
    # Small shapes consistent with the module: batch=8, num_topics=32, vocab=128.
    B, NUM_TOPICS, VOCAB = 8, 32, 128

    key = jax.random.PRNGKey(0)
    k_x, k_w, k_b = jax.random.split(key, 3)

    # Deterministic parameter init mimicking nn.Linear defaults
    # (uniform(-1/sqrt(in), 1/sqrt(in))); BatchNorm1d: gamma=1, beta=0.
    bound = 1.0 / math.sqrt(NUM_TOPICS)
    weight = jax.random.uniform(k_w, (VOCAB, NUM_TOPICS), jnp.float32, -bound, bound)
    bias = jax.random.uniform(k_b, (VOCAB,), jnp.float32, -bound, bound)
    gamma = jnp.ones((VOCAB,), jnp.float32)
    beta = jnp.zeros((VOCAB,), jnp.float32)

    proportions = jax.random.uniform(k_x, (B, NUM_TOPICS), jnp.float32)

    # One-time parameter prep (layout / shaping), outside the call path.
    w_t, b_row, g_row, be_row = prepare_params(weight, bias, gamma, beta)

    out = ne_topic_decoder(proportions, w_t, b_row, g_row, be_row)
    out = jax.block_until_ready(out)

    ref = _reference(proportions, weight, bias, gamma, beta)

    assert out.shape == (B, VOCAB)
    assert out.dtype == jnp.float32
    assert jnp.allclose(out, ref, atol=1e-5, rtol=1e-5)
    assert jnp.allclose(jnp.sum(out, axis=1), jnp.ones((B,)), atol=1e-5)

    print("KERNEL_OK")
</pallas_src>

<mosaic_0001>
module attributes {stable_mosaic.version = 11 : i64} {
  func.func @_decoder_kernel(%arg0: memref<8x32xf32, #tpu.memory_space<vmem>>, %arg1: memref<32x128xf32, #tpu.memory_space<vmem>>, %arg2: memref<1x128xf32, #tpu.memory_space<vmem>>, %arg3: memref<1x128xf32, #tpu.memory_space<vmem>>, %arg4: memref<1x128xf32, #tpu.memory_space<vmem>>, %arg5: memref<8x128xf32, #tpu.memory_space<vmem>>) attributes {dimension_semantics = [], scalar_prefetch = 0 : i64, scratch_operands = 0 : i64, tpu.core_type = #tpu.core_type<tc>} {
    %c0 = arith.constant 0 : index
    %c0_0 = arith.constant 0 : index
    %0 = vector.load %arg0[%c0, %c0_0] : memref<8x32xf32, #tpu.memory_space<vmem>>, vector<8x32xf32>
    %c0_1 = arith.constant 0 : index
    %c0_2 = arith.constant 0 : index
    %1 = vector.load %arg1[%c0_1, %c0_2] : memref<32x128xf32, #tpu.memory_space<vmem>>, vector<32x128xf32>
    %cst = arith.constant dense<0.000000e+00> : vector<8x128xf32>
    %2 = tpu.matmul %0, %1, %cst {dimension_numbers = #tpu.dot_dimension_numbers<[1], [0], [0], [1], [0, 0, 1, 1], [], []>} : vector<8x32xf32>, vector<32x128xf32>, vector<8x128xf32> -> vector<8x128xf32>
    %c0_3 = arith.constant 0 : index
    %c0_4 = arith.constant 0 : index
    %3 = vector.load %arg2[%c0_3, %c0_4] : memref<1x128xf32, #tpu.memory_space<vmem>>, vector<1x128xf32>
    %4 = vector.broadcast %3 : vector<1x128xf32> to vector<8x128xf32>
    %5 = arith.addf %2, %4 : vector<8x128xf32>
    %cst_5 = arith.constant dense<0.000000e+00> : vector<128xf32>
    %6 = vector.multi_reduction <add>, %5, %cst_5 [0] : vector<8x128xf32> to vector<128xf32>
    %7 = vector.shape_cast %6 : vector<128xf32> to vector<1x128xf32>
    %cst_6 = arith.constant 8.000000e+00 : f32
    %8 = vector.broadcast %cst_6 : f32 to vector<1x128xf32>
    %9 = arith.divf %7, %8 : vector<1x128xf32>
    %10 = vector.broadcast %9 : vector<1x128xf32> to vector<8x128xf32>
    %11 = arith.subf %5, %10 : vector<8x128xf32>
    %12 = arith.mulf %11, %11 : vector<8x128xf32>
    %cst_7 = arith.constant dense<0.000000e+00> : vector<128xf32>
    %13 = vector.multi_reduction <add>, %12, %cst_7 [0] : vector<8x128xf32> to vector<128xf32>
    %14 = vector.shape_cast %13 : vector<128xf32> to vector<1x128xf32>
    %cst_8 = arith.constant 8.000000e+00 : f32
    %15 = vector.broadcast %cst_8 : f32 to vector<1x128xf32>
    %16 = arith.divf %14, %15 : vector<1x128xf32>
    %cst_9 = arith.constant 9.99999974E-6 : f32
    %17 = vector.broadcast %cst_9 : f32 to vector<1x128xf32>
    %18 = arith.addf %16, %17 : vector<1x128xf32>
    %19 = math.rsqrt %18 : vector<1x128xf32>
    %20 = vector.broadcast %19 : vector<1x128xf32> to vector<8x128xf32>
    %21 = arith.mulf %11, %20 : vector<8x128xf32>
    %c0_10 = arith.constant 0 : index
    %c0_11 = arith.constant 0 : index
    %22 = vector.load %arg3[%c0_10, %c0_11] : memref<1x128xf32, #tpu.memory_space<vmem>>, vector<1x128xf32>
    %23 = vector.broadcast %22 : vector<1x128xf32> to vector<8x128xf32>
    %24 = arith.mulf %21, %23 : vector<8x128xf32>
    %c0_12 = arith.constant 0 : index
    %c0_13 = arith.constant 0 : index
    %25 = vector.load %arg4[%c0_12, %c0_13] : memref<1x128xf32, #tpu.memory_space<vmem>>, vector<1x128xf32>
    %26 = vector.broadcast %25 : vector<1x128xf32> to vector<8x128xf32>
    %27 = arith.addf %24, %26 : vector<8x128xf32>
    %cst_14 = arith.constant dense<0xFF800000> : vector<8xf32>
    %28 = vector.multi_reduction <maximumf>, %27, %cst_14 [1] : vector<8x128xf32> to vector<8xf32>
    %29 = vector.shape_cast %28 : vector<8xf32> to vector<8x1xf32>
    %30 = vector.broadcast %29 : vector<8x1xf32> to vector<8x128xf32>
    %31 = arith.subf %27, %30 : vector<8x128xf32>
    %32 = math.exp %31 : vector<8x128xf32>
    %cst_15 = arith.constant dense<0.000000e+00> : vector<8xf32>
    %33 = vector.multi_reduction <add>, %32, %cst_15 [1] : vector<8x128xf32> to vector<8xf32>
    %34 = vector.shape_cast %33 : vector<8xf32> to vector<8x1xf32>
    %35 = vector.broadcast %34 : vector<8x1xf32> to vector<8x128xf32>
    %36 = arith.divf %32, %35 : vector<8x128xf32>
    %c0_16 = arith.constant 0 : index
    %c0_17 = arith.constant 0 : index
    %37 = vector.load %arg5[%c0_16, %c0_17] : memref<8x128xf32, #tpu.memory_space<vmem>>, vector<8x128xf32>
    tpu.vector_store %arg5[%c0_16, %c0_17], %36 {strides = array<i32>} : memref<8x128xf32, #tpu.memory_space<vmem>>, vector<8x128xf32>,
    return
  }
}

</mosaic_0001>

<llo_original>
// kernel: tpu_custom_call.1
$region0: #{tpu_custom_call.1}
  #allocation0 [shape = 'u32[]', space=smem, size = 0x4, offset = 0x4, fixed_abs, tag = 'smem constant byte address 0x4 - core index']
  #allocation1 [shape = 'u32[144,128]{1,0:T(1,128)}', space=vmem, size = 0x12000, scoped, tag = 'internal scratch']
  %s0 = inlined_call_operand.hbm [shape: f32[8,32], index: 0, kind: input, shape index: {}]
  %s1 = inlined_call_operand.hbm [shape: f32[32,128], index: 1, kind: input, shape index: {}]
  %s2 = inlined_call_operand.vmem [shape: f32[1,128], index: 2, kind: input, shape index: {}]
  %s3 = inlined_call_operand.vmem [shape: f32[1,128], index: 3, kind: input, shape index: {}]
  %s4 = inlined_call_operand.vmem [shape: f32[1,128], index: 4, kind: input, shape index: {}]
  %s5 = inlined_call_operand.hbm [shape: f32[8,128], index: 5, kind: output, shape index: {}]
  %s6 = sld [smem:[#allocation0]]
  $region38: #{tpu_custom_call.1} parent=0
    _
  %s8 = ssub.s32 1, %s6
  %s9 = scalar_select 0, %s8, %s6
  $region1: #{tpu_custom_call.1} parent=0
    #allocation2 [shape = 'u8[4096]{0}', space=vmem, size = 0x1000, scoped, tag = 'input window, operand 0, single buffered']
    #allocation3 [shape = 's32[1]{0}', space=sflag, size = 0x4, scoped, tag = 'scoped memory for tpu_custom_call.1']
    #allocation4 [shape = 's32[1]{0}', space=sflag, size = 0x4, scoped, tag = 'scoped memory for tpu_custom_call.1']
    #allocation5 [shape = 'u8[16384]{0}', space=vmem, size = 0x4000, scoped, tag = 'input window, operand 1, single buffered']
    #allocation6 [shape = 's32[1]{0}', space=sflag, size = 0x4, scoped, tag = 'scoped memory for tpu_custom_call.1']
    #allocation7 [shape = 'u8[4096]{0}', space=vmem, size = 0x1000, scoped, tag = 'output window, operand 0, single buffered']
    %10 = vsyncpa [#allocation3], 0
    %11 = vsyncpa [#allocation6], 0
    %12 = vsyncpa [#allocation4], 0
    // Predicated region
    $region2: #{tpu_custom_call.1} parent=1 // pred_check
      _
    $region3: #{tpu_custom_call.1} parent=1 // pred_check_branch
      %14 = sbr.rel (0) target = $region5
    $region4: #{tpu_custom_call.1} parent=1 // pred_region
      %s16 = ssub.s32 128, 128
      %17 = vsyncadd [#allocation3], %s16
      %s19 = sshll.u32 [#allocation2], 4
      %s20 = int_to_ptr.vmem [resolvable:$true] %s19
      %22 = dma.hbm_to_vmem [thread:$0]  %s0, 128, %s20, [#allocation3]
    $region5: #{tpu_custom_call.1} parent=1 // pred_fallthru
      _
    // Predicated region
    $region6: #{tpu_custom_call.1} parent=1 // pred_check
      _
    $region7: #{tpu_custom_call.1} parent=1 // pred_check_branch
      %24 = sbr.rel (0) target = $region9
    $region8: #{tpu_custom_call.1} parent=1 // pred_region
      %s26 = ssub.s32 512, 512
      %27 = vsyncadd [#allocation6], %s26
      %s28 = sshll.u32 [#allocation5], 4
      %s29 = int_to_ptr.vmem [resolvable:$true] %s28
      %34 = dma.hbm_to_vmem [thread:$0]  %s1, 512, %s29, [#allocation6], 128, 128, 8
    $region9: #{tpu_custom_call.1} parent=1 // pred_fallthru
      _
    // Predicated region
    $region10: #{tpu_custom_call.1} parent=1 // pred_check
      _
    $region11: #{tpu_custom_call.1} parent=1 // pred_check_branch
      %36 = sbr.rel (0) target = $region13
    $region12: #{tpu_custom_call.1} parent=1 // pred_region
      _
    $region13: #{tpu_custom_call.1} parent=1 // pred_fallthru
      _
    // Predicated region
    $region14: #{tpu_custom_call.1} parent=1 // pred_check
      _
    $region15: #{tpu_custom_call.1} parent=1 // pred_check_branch
      %38 = sbr.rel (0) target = $region17
    $region16: #{tpu_custom_call.1} parent=1 // pred_region
      _
    $region17: #{tpu_custom_call.1} parent=1 // pred_fallthru
      _
    // Predicated region
    $region18: #{tpu_custom_call.1} parent=1 // pred_check
      _
    $region19: #{tpu_custom_call.1} parent=1 // pred_check_branch
      %40 = sbr.rel (0) target = $region21
    $region20: #{tpu_custom_call.1} parent=1 // pred_region
      _
    $region21: #{tpu_custom_call.1} parent=1 // pred_fallthru
      _
    // Predicated region
    $region22: #{tpu_custom_call.1} parent=1 // pred_check
      _
    $region23: #{tpu_custom_call.1} parent=1 // pred_check_branch
      %42 = sbr.rel (0) target = $region25
    $region24: #{tpu_custom_call.1} parent=1 // pred_region
      %43 = dma.done [#allocation3], 128
    $region25: #{tpu_custom_call.1} parent=1 // pred_fallthru
      _
    // Predicated region
    $region26: #{tpu_custom_call.1} parent=1 // pred_check
      _
    $region27: #{tpu_custom_call.1} parent=1 // pred_check_branch
      %45 = sbr.rel (0) target = $region29
    $region28: #{tpu_custom_call.1} parent=1 // pred_region
      %46 = dma.done [#allocation6], 512
    $region29: #{tpu_custom_call.1} parent=1 // pred_fallthru
      _
    %v47 = vld [vmem:[#allocation2] sm:$0xff]
    %v48 = vld [vmem:[#allocation5] sm:$0xff]
    %v49 = vld [vmem:[#allocation5 + $0x8] sm:$0xff]
    %v50 = vld [vmem:[#allocation5 + $0x10] sm:$0xff]
    %v51 = vld [vmem:[#allocation5 + $0x18] sm:$0xff]
    %v52 = vld [vmem:[%s2] sm:$0x1]
    %v54 = vlaneseq
    %v55 = vshrl.u32 %v54, 7
    %v56 = vsub.s32 0, %v55
    %v57 = vrot.slane %v52, %v56
    %vm59 = vcmask 261120
    %v61 = vsel %vm59, %v47, 0
    %63 = vmatprep.subr.mxu0 0.0
    %64 = vmatpush1.msra.mxu0 0.0
    %65 = vmatprep.subr.mxu0 0.0
    %66 = vmatpush1.msra.mxu0 0.0
    %67 = vmatprep.subr.mxu0 0.0
    %68 = vmatpush1.msra.mxu0 0.0
    %69 = vmatprep.subr.mxu0 0.0
    %70 = vmatpush1.msra.mxu0 0.0
    %71 = vmatprep.subr.mxu0 0.0
    %72 = vmatpush1.msra.mxu0 0.0
    %73 = vmatprep.subr.mxu0 0.0
    %74 = vmatpush1.msra.mxu0 0.0
    %75 = vmatprep.subr.mxu0 0.0
    %76 = vmatpush1.msra.mxu0 0.0
    %77 = vmatprep.subr.mxu0 0.0
    %78 = vmatpush1.msra.mxu0 0.0
    %79 = vmatprep.subr.mxu0 0.0
    %80 = vmatpush1.msra.mxu0 0.0
    %81 = vmatprep.subr.mxu0 0.0
    %82 = vmatpush1.msra.mxu0 0.0
    %83 = vmatprep.subr.mxu0 0.0
    %84 = vmatpush1.msra.mxu0 0.0
    %85 = vmatprep.subr.mxu0 0.0
    %86 = vmatpush1.msra.mxu0 0.0
    %87 = vmatprep.subr.mxu0 0.0
    %88 = vmatpush1.msra.mxu0 %v51
    %89 = vmatprep.subr.mxu0 0.0
    %90 = vmatpush1.msra.mxu0 %v50
    %91 = vmatprep.subr.mxu0 0.0
    %92 = vmatpush1.msra.mxu0 %v49
    %93 = vmatprep.subr.mxu0 0.0
    %94 = vmatpush1.msra.mxu0 %v48
    %95 = vmatprep.subr.mxu0 0.0
    %96 = vmatpush2.msra.mxu0 0.0
    %97 = vmatprep.subr.mxu0 0.0
    %98 = vmatpush2.msra.mxu0 0.0
    %99 = vmatprep.subr.mxu0 0.0
    %100 = vmatpush2.msra.mxu0 0.0
    %101 = vmatprep.subr.mxu0 0.0
    %102 = vmatpush2.msra.mxu0 0.0
    %103 = vmatprep.subr.mxu0 0.0
    %104 = vmatpush2.msra.mxu0 0.0
    %105 = vmatprep.subr.mxu0 0.0
    %106 = vmatpush2.msra.mxu0 0.0
    %107 = vmatprep.subr.mxu0 0.0
    %108 = vmatpush2.msra.mxu0 0.0
    %109 = vmatprep.subr.mxu0 0.0
    %110 = vmatpush2.msra.mxu0 0.0
    %111 = vmatprep.subr.mxu0 0.0
    %112 = vmatpush2.msra.mxu0 0.0
    %113 = vmatprep.subr.mxu0 0.0
    %114 = vmatpush2.msra.mxu0 0.0
    %115 = vmatprep.subr.mxu0 0.0
    %116 = vmatpush2.msra.mxu0 0.0
    %117 = vmatprep.subr.mxu0 0.0
    %118 = vmatpush2.msra.mxu0 0.0
    %119 = vmatprep.subr.mxu0 0.0
    %120 = vmatpush2.msra.mxu0 0.0
    %121 = vmatprep.subr.mxu0 0.0
    %122 = vmatpush2.msra.mxu0 0.0
    %123 = vmatprep.subr.mxu0 0.0
    %124 = vmatpush2.msra.mxu0 0.0
    %125 = vmatprep.subr.mxu0 0.0
    %126 = vmatpush2.msra.mxu0 0.0
    %127 = vmatprep.mubr.f32.mxu0 0.0
    %128 = vmatmul.mubr.f32.gmra.mxu0 %v61
    %v129 = vpop.f32.mrf.mxu0
    %v130 = vadd.f32 %v57, %v129
    %v131 = vpop.f32.mrf.mxu0
    %132 = vdwg.mxu0
    %v133 = vrot.slane %v130, 4
    %v134 = vadd.f32 %v130, %v133
    %v135 = vrot.slane %v134, 2
    %v136 = vadd.f32 %v134, %v135
    %v137 = vrot.slane %v136, 1
    %v138 = vadd.f32 %v136, %v137
    %v139 = vrcp.pop 8.0
    %v140 = vmul.f32 %v138, %v139
    %v141 = vsub.f32 %v130, %v140
    %v142 = vmul.f32 %v141, %v141
    %v143 = vrot.slane %v142, 4
    %v144 = vadd.f32 %v142, %v143
    %v145 = vrot.slane %v144, 2
    %v146 = vadd.f32 %v144, %v145
    %v147 = vrot.slane %v146, 1
    %v148 = vadd.f32 %v146, %v147
    %v149 = vmul.f32 %v148, %v139
    %v150 = vadd.f32 %v149, 1e-05
    %v151 = vrsqrt.pop %v150
    %v152 = vmul.f32 %v141, %v151
    %v153 = vld [vmem:[%s3] sm:$0x1]
    %v155 = vlaneseq
    %v156 = vshrl.u32 %v155, 7
    %v157 = vsub.s32 0, %v156
    %v158 = vrot.slane %v153, %v157
    %v160 = vmul.f32 %v152, %v158
    %v161 = vld [vmem:[%s4] sm:$0x1]
    %v163 = vlaneseq
    %v164 = vshrl.u32 %v163, 7
    %v165 = vsub.s32 0, %v164
    %v166 = vrot.slane %v161, %v165
    %v168 = vadd.f32 %v160, %v166
    %169 = vmax.xlane.f32.xlu0 %v168
    %v170 = vpop.xlane.xlu0 %169
    %v171 = vsub.f32 %v168, %v170
    %v172 = vmul.f32 %v171, 1.442695
    %v173 = vpow.pop %v172
    %174 = vadd.xlane.f32.xlu0 %v173
    %v175 = vpop.xlane.xlu0 %174
    %v176 = vrcp.pop %v175
    %v177 = vmul.f32 %v173, %v176
    %178 = vst [vmem:[#allocation7] sm:$0xff] %v177
    // Predicated region
    $region30: #{tpu_custom_call.1} parent=1 // pred_check
      _
    $region31: #{tpu_custom_call.1} parent=1 // pred_check_branch
      %180 = sbr.rel (0) target = $region33
    $region32: #{tpu_custom_call.1} parent=1 // pred_region
      %s182 = ssub.s32 128, 128
      %183 = vsyncadd [#allocation4], %s182
      %s185 = sshll.u32 [#allocation7], 4
      %s186 = int_to_ptr.vmem [resolvable:$true] %s185
      %188 = dma.vmem_to_hbm [thread:$0]  %s186, 128, %s5, [#allocation4]
    $region33: #{tpu_custom_call.1} parent=1 // pred_fallthru
      _
    // Predicated region
    $region34: #{tpu_custom_call.1} parent=1 // pred_check
      _
    $region35: #{tpu_custom_call.1} parent=1 // pred_check_branch
      %190 = sbr.rel (0) target = $region37
    $region36: #{tpu_custom_call.1} parent=1 // pred_region
      %191 = dma.done [#allocation4], 128
    $region37: #{tpu_custom_call.1} parent=1 // pred_fallthru
      _
    %192 = vsyncpa [#allocation3], 1
    %193 = vsyncpa [#allocation6], 1
    %194 = vsyncpa [#allocation4], 1

</llo_original>
